<compile_context>
chip_gen: v5e
topology: v5e:2x2
jax: 0.10.0
libtpu: 0.0.40
codegen_flags: <defaults>
</compile_context>

<pallas_src>
import functools

import jax
import jax.numpy as jnp
from jax import lax
from jax.experimental import pallas as pl
from jax.experimental.pallas import tpu as pltpu


# ---------------------------------------------------------------------------
# Pooling kernel: pooled[b, :] = mean/max over hidden[b, 1:S-1, :]
# ---------------------------------------------------------------------------
def _pool_kernel(hs_ref, out_ref, *, mode):
    # hs_ref: (B, S, TH)   out_ref: (B, TH)  (f32)
    hs = hs_ref[...].astype(jnp.float32)
    S = hs.shape[1]
    if mode == "mean":
        total = jnp.sum(hs, axis=1)                              # (B, TH)
        pooled = (total - hs[:, 0, :] - hs[:, S - 1, :]) * (1.0 / (S - 2))
    elif mode == "max":
        row = lax.broadcasted_iota(jnp.int32, (1, S, 1), 1)
        edge = (row == 0) | (row == S - 1)
        pooled = jnp.max(jnp.where(edge, -jnp.inf, hs), axis=1)  # (B, TH)
    else:
        raise ValueError(f"Unsupported pooling mode: {mode}")
    out_ref[...] = pooled.astype(out_ref.dtype)


def _pick_pool_tile(B, S, H, dtype, budget_bytes=8 << 20):
    """Lane-aligned H-tile for the pooling kernel fitting a small VMEM budget."""
    itemsize = jnp.dtype(dtype).itemsize
    if H % 128 != 0:
        return H  # full block (last dim equals array dim)
    for cand in (H, 2048, 1024, 512, 256, 128):
        if cand <= H and H % cand == 0 and 2 * B * S * cand * itemsize <= budget_bytes:
            return cand
    return 128


def _pool(hidden_states, mode):
    B, S, H = hidden_states.shape
    assert S >= 3, "need at least 3 tokens so hidden_states[1:-1] is non-empty"
    th = _pick_pool_tile(B, S, H, hidden_states.dtype)
    kernel = functools.partial(_pool_kernel, mode=mode)
    return pl.pallas_call(
        kernel,
        out_shape=jax.ShapeDtypeStruct((B, H), jnp.float32),
        grid=(H // th,),
        in_specs=[pl.BlockSpec((B, S, th), lambda j: (0, 0, j))],
        out_specs=pl.BlockSpec((B, th), lambda j: (0, j)),
        compiler_params=pltpu.CompilerParams(dimension_semantics=("parallel",)),
    )(hidden_states)


# ---------------------------------------------------------------------------
# Projection kernel: out[:, b] = W[:, :H] @ cls[b] + W[:, H:] @ pooled[b] + bias
# ---------------------------------------------------------------------------
def _project_kernel(cls_ref, pooled_ref, w_ref, b_ref, out_ref):
    # cls_ref/pooled_ref: (B, H); w_ref: (TN, 2H) torch layout;
    # b_ref: (TN, 1);   out_ref: (TN, B)  -> wrapper transposes to (B, H).
    H = cls_ref.shape[-1]
    w_dtype = w_ref.dtype
    # Note: pooled was computed in f32; casting to a bf16 weight dtype here
    # drops pooling precision (acceptable, noted in the review).
    cls_v = cls_ref[...].astype(w_dtype)                         # (B, H)
    pool_v = pooled_ref[...].astype(w_dtype)                     # (B, H)

    w_cls = w_ref[:, :H]      # (TN, H)  lane-aligned static slice
    w_pool = w_ref[:, H:]     # (TN, H)

    # Big weight tile is the (M=TN, K=H) LHS -> no relayout of the streamed
    # slab; only the tiny (B, H) activations are relaid for the (N,K) RHS.
    dn = (((1,), (1,)), ((), ()))                                # contract last axes
    acc = lax.dot_general(w_cls, cls_v, dn,
                          preferred_element_type=jnp.float32)    # (TN, B)
    acc = acc + lax.dot_general(w_pool, pool_v, dn,
                                preferred_element_type=jnp.float32)
    acc = acc + b_ref[...].astype(jnp.float32)                   # (TN,1) bcast
    out_ref[...] = acc.astype(out_ref.dtype)


def _vmem_capacity_bytes():
    try:
        info = pltpu.get_tpu_info()
        cap = getattr(info, "vmem_capacity_bytes", None)
        if cap:
            return int(cap)
    except Exception:
        pass
    return None


def _pick_tile(H, weight_dtype, weight_budget_bytes):
    """Largest lane-aligned output tile dividing H whose double-buffered
    (TN, 2H) weight block fits the budget; 128 as the aligned floor."""
    itemsize = jnp.dtype(weight_dtype).itemsize
    if H % 128 != 0:
        return H  # single full block
    best = 128
    for cand in (2048, 1024, 512, 256):
        if H % cand == 0 and 2 * cand * 2 * H * itemsize <= weight_budget_bytes:
            best = max(best, cand)
    return best


def _project(cls_2d, pooled_2d, weight, bias_col, tn=None):
    B, H = cls_2d.shape
    assert weight.shape == (H, 2 * H)
    assert bias_col.shape == (H, 1)

    cap = _vmem_capacity_bytes()
    # Conservative default works on every generation (v7x: 64 MiB/core with
    # megacore; v5e: 16 MiB scoped default); bump on 128 MiB chips (v5e/v6e).
    weight_budget = 16 << 20
    if cap is not None:
        weight_budget = max(weight_budget, min(32 << 20, cap // 4))

    if tn is None:
        tn = _pick_tile(H, weight.dtype, weight_budget)
    assert H % tn == 0, "output tile must divide H"
    assert tn == H or tn % 128 == 0, "output tile must be lane-aligned"

    w_item = jnp.dtype(weight.dtype).itemsize
    act_item = jnp.dtype(cls_2d.dtype).itemsize
    pool_item = jnp.dtype(pooled_2d.dtype).itemsize
    b_item = jnp.dtype(bias_col.dtype).itemsize
    out_item = jnp.dtype(cls_2d.dtype).itemsize

    vmem_need = (2 * tn * 2 * H * w_item            # double-buffered weight tile
                 + 2 * B * H * (act_item + pool_item)  # resident activations
                 + 2 * tn * b_item                   # bias tiles
                 + 2 * tn * B * out_item             # output tiles
                 + (4 << 20))                        # headroom (f32 acc / temps)
    vmem_limit = max(int(vmem_need), 32 << 20)
    if cap is not None:
        vmem_limit = min(vmem_limit, (cap * 3) // 4)

    cost = pl.CostEstimate(
        flops=int(2 * B * (2 * H) * H),
        transcendentals=0,
        bytes_accessed=int(weight.size * w_item
                           + cls_2d.size * act_item
                           + pooled_2d.size * pool_item
                           + bias_col.size * b_item
                           + B * H * out_item),
    )

    out_hb = pl.pallas_call(
        _project_kernel,
        out_shape=jax.ShapeDtypeStruct((H, B), cls_2d.dtype),
        grid=(H // tn,),
        in_specs=[
            pl.BlockSpec((B, H), lambda j: (0, 0)),        # cls (resident)
            pl.BlockSpec((B, H), lambda j: (0, 0)),        # pooled (resident)
            pl.BlockSpec((tn, 2 * H), lambda j: (j, 0)),   # weight tile (streamed)
            pl.BlockSpec((tn, 1), lambda j: (j, 0)),       # bias tile
        ],
        out_specs=pl.BlockSpec((tn, B), lambda j: (j, 0)),
        compiler_params=pltpu.CompilerParams(
            dimension_semantics=("parallel",),
            vmem_limit_bytes=int(vmem_limit)),
        cost_estimate=cost,
    )(cls_2d, pooled_2d, weight, bias_col)
    return out_hb  # (H, B)


# ---------------------------------------------------------------------------
# Public entry points
# ---------------------------------------------------------------------------
def concat_project_batch(cls_vectors, hidden_states, weight, bias,
                         mode="mean", tn=None):
    """cls_vectors: (B, H), hidden_states: (B, S, H),
    weight: (H, 2H) torch nn.Linear layout (NOT transposed), bias: (H,).
    Returns (B, H).  Each streamed weight tile is reused across all B rows."""
    B, H = cls_vectors.shape
    assert hidden_states.shape[0] == B and hidden_states.shape[-1] == H
    assert weight.shape == (H, 2 * H)
    assert bias.shape == (H,)

    pooled = _pool(hidden_states, mode)                       # (B, H) f32
    out_hb = _project(cls_vectors, pooled, weight, bias.reshape(H, 1), tn=tn)
    return jnp.transpose(out_hb)                              # (B, H)


def concat_project(cls_vector, hidden_states, weight, bias, mode="mean",
                   tn=None):
    """Per-sequence API matching the PyTorch module's forward:
    cls_vector (H,), hidden_states (S, H) -> (H,)."""
    H = cls_vector.shape[-1]
    out = concat_project_batch(cls_vector[None, :], hidden_states[None, ...],
                               weight, bias, mode=mode, tn=tn)
    return out.reshape(H)


def _reference(cls_vector, hidden_states, weight, bias, mode="mean"):
    if mode == "mean":
        pooled = hidden_states[1:-1].mean(axis=0)
    else:
        pooled = hidden_states[1:-1].max(axis=0)
    concatted = jnp.concatenate([cls_vector, pooled], axis=0)
    return concatted @ weight.T + bias


if __name__ == "__main__":
    H = 256   # hidden size (lane-aligned, small stand-in for 768)
    S = 8     # sequence length
    B = 3     # batch for the batched entry point

    key = jax.random.PRNGKey(0)
    k_cls, k_hs, k_w, k_b = jax.random.split(key, 4)

    cls_b = jax.random.normal(k_cls, (B, H), dtype=jnp.float32)
    hs_b = jax.random.normal(k_hs, (B, S, H), dtype=jnp.float32)

    # nn.Linear(2H -> H) parameters kept in torch layout: weight (out,in)=(H,2H)
    bound = 1.0 / jnp.sqrt(2.0 * H)
    weight = jax.random.uniform(k_w, (H, 2 * H), minval=-bound, maxval=bound,
                                dtype=jnp.float32)
    bias = jax.random.uniform(k_b, (H,), minval=-bound, maxval=bound,
                              dtype=jnp.float32)

    for mode in ("mean", "max"):
        # Per-sequence path (matches the PyTorch module), auto tile and an
        # explicit 2-step N-tiling.
        for tile in (None, 128):
            out = concat_project(cls_b[0], hs_b[0], weight, bias,
                                 mode=mode, tn=tile)
            out = jax.block_until_ready(out)
            ref = _reference(cls_b[0], hs_b[0], weight, bias, mode=mode)
            assert out.shape == (H,)
            assert jnp.allclose(out, ref, atol=1e-4, rtol=1e-4), \
                f"mismatch: per-seq mode={mode}, tn={tile}"

        # Batched path (weight stream amortized over B MXU columns).
        outb = concat_project_batch(cls_b, hs_b, weight, bias, mode=mode)
        outb = jax.block_until_ready(outb)
        refb = jnp.stack([_reference(cls_b[b], hs_b[b], weight, bias, mode=mode)
                          for b in range(B)])
        assert outb.shape == (B, H)
        assert jnp.allclose(outb, refb, atol=1e-4, rtol=1e-4), \
            f"mismatch: batched mode={mode}"

    print("KERNEL_OK")
</pallas_src>

<mosaic_0001>
module attributes {stable_mosaic.version = 11 : i64} {
  func.func @_pool_kernel(%arg0: i32, %arg1: memref<1x8x256xf32, #tpu.memory_space<vmem>>, %arg2: memref<1x256xf32, #tpu.memory_space<vmem>>) attributes {dimension_semantics = [#tpu.dimension_semantics<parallel>], iteration_bounds = array<i64: 1>, scalar_prefetch = 0 : i64, scratch_operands = 0 : i64, tpu.core_type = #tpu.core_type<tc>, window_params = [{transform_indices = @transform_0, window_bounds = array<i64: 1, 8, 256>}, {transform_indices = @transform_1, window_bounds = array<i64: 1, 256>}]} {
    %c0 = arith.constant 0 : index
    %c0_0 = arith.constant 0 : index
    %c0_1 = arith.constant 0 : index
    %0 = vector.load %arg1[%c0, %c0_0, %c0_1] : memref<1x8x256xf32, #tpu.memory_space<vmem>>, vector<1x8x256xf32>
    %cst = arith.constant dense<0.000000e+00> : vector<1x256xf32>
    %1 = vector.multi_reduction <add>, %0, %cst [1] : vector<1x8x256xf32> to vector<1x256xf32>
    %2 = vector.extract_strided_slice %0 {offsets = [0, 0, 0], sizes = [1, 1, 256], strides = [1, 1, 1]} : vector<1x8x256xf32> to vector<1x1x256xf32>
    %3 = vector.shape_cast %2 : vector<1x1x256xf32> to vector<1x256xf32>
    %4 = arith.subf %1, %3 : vector<1x256xf32>
    %5 = vector.extract_strided_slice %0 {offsets = [0, 7, 0], sizes = [1, 1, 256], strides = [1, 1, 1]} : vector<1x8x256xf32> to vector<1x1x256xf32>
    %6 = vector.shape_cast %5 : vector<1x1x256xf32> to vector<1x256xf32>
    %7 = arith.subf %4, %6 : vector<1x256xf32>
    %cst_2 = arith.constant 0.166666672 : f32
    %8 = vector.broadcast %cst_2 : f32 to vector<1x256xf32>
    %9 = arith.mulf %7, %8 : vector<1x256xf32>
    %c0_3 = arith.constant 0 : index
    %c0_4 = arith.constant 0 : index
    %10 = vector.load %arg2[%c0_3, %c0_4] : memref<1x256xf32, #tpu.memory_space<vmem>>, vector<1x256xf32>
    tpu.vector_store %arg2[%c0_3, %c0_4], %9 {strides = array<i32>} : memref<1x256xf32, #tpu.memory_space<vmem>>, vector<1x256xf32>,
    return
  }
  func.func @transform_0(%arg0: i32) -> (i32, i32, i32) {
    %c0_i32 = arith.constant 0 : i32
    %c0_i32_0 = arith.constant 0 : i32
    %c0_i32_1 = arith.constant 0 : i32
    return %c0_i32, %c0_i32_0, %arg0 : i32, i32, i32
  }
  func.func @transform_1(%arg0: i32) -> (i32, i32) {
    %c0_i32 = arith.constant 0 : i32
    %c0_i32_0 = arith.constant 0 : i32
    return %c0_i32, %arg0 : i32, i32
  }
}

</mosaic_0001>

<llo_original>
// kernel: tpu_custom_call.1
$region0: #{tpu_custom_call.1}
  #allocation0 [shape = 'u32[]', space=smem, size = 0x4, offset = 0x4, fixed_abs, tag = 'smem constant byte address 0x4 - core index']
  #allocation1 [shape = 'u32[72,128]{1,0:T(1,128)}', space=vmem, size = 0x9000, scoped, tag = 'internal scratch']
  %s0 = inlined_call_operand.hbm [shape: f32[1,8,256], index: 0, kind: input, shape index: {}]
  %s1 = inlined_call_operand.hbm [shape: f32[1,256], index: 1, kind: output, shape index: {}]
  %s2 = sld [smem:[#allocation0]]
  $region18: #{tpu_custom_call.1} parent=0
    _
  %s4 = ssub.s32 1, %s2
  %s5 = scalar_select 0, %s4, %s2
  $region1: #{tpu_custom_call.1} parent=0
    #allocation2 [shape = 'u8[8192]{0}', space=vmem, size = 0x2000, scoped, tag = 'input window, operand 0, single buffered']
    #allocation3 [shape = 's32[1]{0}', space=sflag, size = 0x4, scoped, tag = 'scoped memory for tpu_custom_call.1']
    #allocation4 [shape = 's32[1]{0}', space=sflag, size = 0x4, scoped, tag = 'scoped memory for tpu_custom_call.1']
    #allocation5 [shape = 'u8[1024]{0}', space=vmem, size = 0x400, scoped, tag = 'output window, operand 0, single buffered']
    %6 = vsyncpa [#allocation3], 0
    %7 = vsyncpa [#allocation4], 0
    // Predicated region
    $region2: #{tpu_custom_call.1} parent=1 // pred_check
      _
    $region3: #{tpu_custom_call.1} parent=1 // pred_check_branch
      %9 = sbr.rel (0) target = $region5
    $region4: #{tpu_custom_call.1} parent=1 // pred_region
      %11 = vsyncadd [#allocation3], 0
      %s13 = sshll.u32 %s0, 4
      %s14 = int_to_ptr.hbm [resolvable:$true] %s13
      %s15 = sshll.u32 [#allocation2], 4
      %s16 = int_to_ptr.vmem [resolvable:$true] %s15
      %18 = dma.hbm_to_vmem [thread:$0]  %s14, 256, %s16, [#allocation3]
    $region5: #{tpu_custom_call.1} parent=1 // pred_fallthru
      _
    // Predicated region
    $region6: #{tpu_custom_call.1} parent=1 // pred_check
      _
    $region7: #{tpu_custom_call.1} parent=1 // pred_check_branch
      %20 = sbr.rel (0) target = $region9
    $region8: #{tpu_custom_call.1} parent=1 // pred_region
      %22 = dma.done [#allocation3], 256
    $region9: #{tpu_custom_call.1} parent=1 // pred_fallthru
      _
    %v23 = vld [vmem:[#allocation2] sm:$0xff]
    %v24 = vld [vmem:[#allocation2 + $0x8] sm:$0xff]
    %v25 = vrot.slane %v23, 4
    %v26 = vadd.f32 %v23, %v25
    %v27 = vrot.slane %v26, 2
    %v28 = vadd.f32 %v26, %v27
    %v29 = vrot.slane %v28, 1
    %v30 = vadd.f32 %v28, %v29
    %v31 = vrot.slane %v24, 4
    %v32 = vadd.f32 %v24, %v31
    %v33 = vrot.slane %v32, 2
    %v34 = vadd.f32 %v32, %v33
    %v35 = vrot.slane %v34, 1
    %v36 = vadd.f32 %v34, %v35
    %v37 = vsub.f32 %v30, %v23
    %v38 = vsub.f32 %v36, %v24
    %v41 = vrot.slane %v23, 7
    %v42 = vrot.slane %v24, 7
    %v45 = vsub.f32 %v37, %v41
    %v46 = vsub.f32 %v38, %v42
    %v47 = vmul.f32 %v45, 0.16666667
    %v48 = vmul.f32 %v46, 0.16666667
    %v51 = vrot.slane %v48, 7
    %vm52 = vcmask 1040384
    %v53 = vsel %vm52, %v47, %v51
    %v55 = vlaneseq
    %vm56 = vcmp.ge.s32.totalorder %v55, 0
    %vm57 = vcmp.lt.s32.totalorder %v55, 256
    %vm58 = vmand %vm56, %vm57
    %59 = vst.msk [vmem:[#allocation5] sm:$0x3] %vm58, %v53
    // Predicated region
    $region10: #{tpu_custom_call.1} parent=1 // pred_check
      _
    $region11: #{tpu_custom_call.1} parent=1 // pred_check_branch
      %61 = sbr.rel (0) target = $region13
    $region12: #{tpu_custom_call.1} parent=1 // pred_region
      %63 = vsyncadd [#allocation4], 0
      %s65 = sshll.u32 [#allocation5], 4
      %s66 = int_to_ptr.vmem [resolvable:$true] %s65
      %s67 = sshll.u32 %s1, 4
      %s68 = int_to_ptr.hbm [resolvable:$true] %s67
      %70 = dma.vmem_to_hbm [thread:$0]  %s66, 32, %s68, [#allocation4]
    $region13: #{tpu_custom_call.1} parent=1 // pred_fallthru
      _
    // Predicated region
    $region14: #{tpu_custom_call.1} parent=1 // pred_check
      _
    $region15: #{tpu_custom_call.1} parent=1 // pred_check_branch
      %72 = sbr.rel (0) target = $region17
    $region16: #{tpu_custom_call.1} parent=1 // pred_region
      %74 = dma.done [#allocation4], 32
    $region17: #{tpu_custom_call.1} parent=1 // pred_fallthru
      _
    %75 = vsyncpa [#allocation3], 1
    %76 = vsyncpa [#allocation4], 1

</llo_original>
